<compile_context>
chip_gen: v6e
topology: v6e:2x2x1
jax: 0.10.0
libtpu: 0.0.40
codegen_flags: <defaults>
</compile_context>

<pallas_src>
import jax
import jax.numpy as jnp
from jax.experimental import pallas as pl
from jax.experimental.pallas import tpu as pltpu


def _round_up(x, m):
    return ((x + m - 1) // m) * m


def bi_attention_kernel(v_ref, q_ref, wv_ref, bv_ref, wq_ref, bq_ref,
                        hmat_ref, hb_ref, p_ref, logits_ref):
    """One batch tile (Bt elements) per grid step.

    v_ref:  (Bt, Vp, Dv)   q_ref:  (Bt, Qp, Dq)   (MXU compute dtype: bf16 or f32)
    wv_ref: (Dv, HKp)      wq_ref: (Dq, HKp)      (MXU compute dtype)
    bv_ref/bq_ref: (1, HKp) f32
    hmat_ref: (G, HKp) f32
    hb_ref:   (1, G*Qp) f32  -- h_bias[g] repeated over q lanes; -inf in padded q lanes
    p_ref / logits_ref: (Bt, G, Vp*Qp) f32  (Vp*Qp multiple of 128 -> lane dense)
    """
    Bt, Vp, Dv = v_ref.shape
    _, Qp, Dq = q_ref.shape
    G, HKp = hmat_ref.shape
    VQp = p_ref.shape[-1]                              # == Vp * Qp
    cd = v_ref.dtype                                   # MXU operand dtype

    v_in = v_ref[...]
    q_in = q_ref[...]

    # FCNet (weight-normed Linear folded host-side) + ReLU, f32 accumulation.
    # Whole batch tile stacked on the MXU M axis (Vp, Qp multiples of 8 -> free reshapes).
    v_feat = jnp.maximum(
        jnp.dot(v_in.reshape(Bt * Vp, Dv), wv_ref[...],
                preferred_element_type=jnp.float32) + bv_ref[...], 0.0)     # (Bt*Vp, HKp)
    q_feat = jnp.maximum(
        jnp.dot(q_in.reshape(Bt * Qp, Dq), wq_ref[...],
                preferred_element_type=jnp.float32) + bq_ref[...], 0.0)     # (Bt*Qp, HKp)

    # All G glimpses fused into a single batched bilinear dot, using the identity
    #   (v_feat * h_g) @ q_feat^T == v_feat @ (q_feat * h_g)^T
    # qs rows are ordered (g, q):  qs[b, g*Qp + q, :] = q_feat[b, q, :] * h_mat[g, :]
    q_feat3 = q_feat.reshape(Bt, Qp, HKp)                                   # f32 (v5e-safe VPU)
    qs = jnp.concatenate(
        [(q_feat3 * hmat_ref[g:g + 1, :]).astype(cd) for g in range(G)],
        axis=1)                                                             # (Bt, G*Qp, HKp)
    v_feat_c = v_feat.astype(cd).reshape(Bt, Vp, HKp)

    lg = jax.lax.dot_general(                                               # (Bt, Vp, G*Qp) f32
        v_feat_c, qs,
        dimension_numbers=(((2,), (2,)), ((0,), (0,))),
        preferred_element_type=jnp.float32)

    # + h_bias[g]; padded q lanes already hold -inf inside hb_ref.
    lg = lg + hb_ref[...]                                                   # (1, G*Qp) broadcast
    # Rows of v that are entirely zero (incl. padded V rows) get -inf logits.
    v_zero = (jnp.sum(jnp.abs(v_in.astype(jnp.float32)), axis=-1,
                      keepdims=True) == 0.0)                                # (Bt, Vp, 1)
    lg = jnp.where(v_zero, -jnp.inf, lg)

    # The single relayout (Bt, Vp, G*Qp) -> (Bt, G, Vp*Qp), spelled as static lane
    # slices + sublane->lane merges (the pattern Mosaic lowers cheaply).
    lg_flat = jnp.concatenate(
        [lg[:, :, g * Qp:(g + 1) * Qp].reshape(Bt, 1, VQp) for g in range(G)],
        axis=1)                                                             # (Bt, G, Vp*Qp)

    # One lane-dense, unmasked store per output per grid step.
    logits_ref[...] = lg_flat

    # softmax over the flattened (padded) v*q axis, per (batch, glimpse).
    # Padded lanes hold -inf -> exp == 0 -> no effect on normalization.
    # NOTE: if *every* v row is zero this yields NaN, matching the PyTorch
    # reference (softmax over all -inf).
    m = jnp.max(lg_flat, axis=-1, keepdims=True)                            # (Bt, G, 1)
    e = jnp.exp(lg_flat - m)
    s = jnp.sum(e, axis=-1, keepdims=True)
    r = pl.reciprocal(s, approx=True)                                       # EUP vrcp (free slot)
    r = r * (2.0 - s * r)                                                   # one Newton step -> ~f32
    p_ref[...] = e * r


def bi_attention(v, q, wv, bv, wq, bq, hmat, hbias, *,
                 mxu_dtype=jnp.bfloat16, batch_tile=None):
    """v: [B,V,Dv]  q: [B,Q,Dq]  wv: [Dv,HK]  bv: [1,HK]  wq: [Dq,HK]  bq: [1,HK]
       hmat: [G,HK]  hbias: [G,1]  ->  (p, logits) both [B,G,V,Q] float32."""
    B, V, Dv = v.shape
    _, Q, Dq = q.shape
    HK = wv.shape[1]
    G = hmat.shape[0]

    # ---- exact padding targets for full-lane / full-sublane tiles ----
    Vp = _round_up(V, 8)        # sublane-aligned v rows (padded rows are all-zero)
    Qp = _round_up(Q, 16)       # 8 * 16 = 128  ->  Vp*Qp is a multiple of 128
    HKp = _round_up(HK, 128)    # zero-padded contraction dim (numerically exact)
    VQp = Vp * Qp

    itemsize = jnp.dtype(mxu_dtype).itemsize

    # ---- per-TC VMEM budget & batch tiling ----
    try:
        vmem_cap = int(pltpu.get_tpu_info().vmem_capacity_bytes)
    except Exception:
        vmem_cap = 64 << 20                                 # v7x per-TC budget as safe fallback
    vmem_budget = min(vmem_cap * 3 // 4, 112 << 20)         # headroom for Mosaic scratch

    weight_bytes = (Dv + Dq) * HKp * itemsize + (2 * HKp + G * HKp + G * Qp) * 4

    def kernel_vmem_bytes(bt):
        io_blocks = bt * (Vp * Dv + Qp * Dq) * itemsize + 2 * bt * G * VQp * 4
        live = (bt * (Vp + Qp) * HKp * 4                    # v_feat / q_feat (f32)
                + bt * (Vp + G * Qp) * HKp * itemsize       # MXU operands
                + bt * G * Qp * HKp * 4                     # qs pieces before cast
                + 3 * bt * G * VQp * 4)                     # lg / lg_flat / e
        return 2 * weight_bytes + 2 * io_blocks + live      # weights + double-buffered blocks

    if batch_tile is None:
        # Target >= 256 rows on the MXU M axis for the FCNet matmuls (v6e/v7x tile).
        batch_tile = max(1, 256 // max(1, min(Vp, Qp)))
    batch_tile = int(batch_tile)
    while batch_tile > 1 and kernel_vmem_bytes(batch_tile) > vmem_budget:
        batch_tile //= 2

    Bt = max(1, int(min(batch_tile, B)))
    nb = int(pl.cdiv(B, Bt))
    if nb == 1 and B > 1:
        # Keep >= 2 grid steps so the "parallel" axis can shard across both
        # TensorCores on v7x-class parts.
        Bt = int(pl.cdiv(B, 2))
        nb = int(pl.cdiv(B, Bt))
    Bp = nb * Bt

    # ---- host-side padding (batch / V / Q / HK), all exact ----
    # Padded batch rows & padded V rows are all-zero -> hit the v_mask (-inf) branch;
    # their (possibly NaN) softmax rows are sliced off below.
    v_pad = jnp.pad(v, ((0, Bp - B), (0, Vp - V), (0, 0)))
    q_pad = jnp.pad(q, ((0, Bp - B), (0, Qp - Q), (0, 0)))
    wv_pad = jnp.pad(wv, ((0, 0), (0, HKp - HK)))
    wq_pad = jnp.pad(wq, ((0, 0), (0, HKp - HK)))
    bv_pad = jnp.pad(bv, ((0, 0), (0, HKp - HK)))
    bq_pad = jnp.pad(bq, ((0, 0), (0, HKp - HK)))
    hmat_pad = jnp.pad(hmat, ((0, 0), (0, HKp - HK)))

    # h_bias per glimpse repeated across q lanes; padded q lanes get -inf so they
    # vanish under the softmax (exp -> 0) and are sliced off afterwards.
    hb_lanes = jnp.where(jnp.arange(Qp) < Q,
                         hbias.astype(jnp.float32), -jnp.inf).reshape(1, G * Qp)

    # MXU operands (activations + large weights) in mxu_dtype (bf16 halves DMA bytes /
    # VMEM and runs the MXU at native rate); biases / h_mat / h_bias stay f32 and all
    # VPU/EUP math inside the kernel is f32 (v5e-safe).
    v_c = v_pad.astype(mxu_dtype)
    q_c = q_pad.astype(mxu_dtype)
    wv_c = wv_pad.astype(mxu_dtype)
    wq_c = wq_pad.astype(mxu_dtype)
    bv32 = bv_pad.astype(jnp.float32)
    bq32 = bq_pad.astype(jnp.float32)
    hmat32 = hmat_pad.astype(jnp.float32)

    out_shape = (jax.ShapeDtypeStruct((Bp, G, VQp), jnp.float32),
                 jax.ShapeDtypeStruct((Bp, G, VQp), jnp.float32))

    # TODO(synk): on v7x with production-size weights, single-buffer the six
    # constant-index parameter specs below via pipeline_mode=pl.Buffered(1).
    grid_spec = pltpu.PrefetchScalarGridSpec(
        num_scalar_prefetch=0,
        grid=(nb,),
        in_specs=[
            pl.BlockSpec((Bt, Vp, Dv), lambda b: (b, 0, 0)),
            pl.BlockSpec((Bt, Qp, Dq), lambda b: (b, 0, 0)),
            # Constant-index parameters: fetched once and revisited across the grid.
            pl.BlockSpec((Dv, HKp), lambda b: (0, 0)),
            pl.BlockSpec((1, HKp), lambda b: (0, 0)),
            pl.BlockSpec((Dq, HKp), lambda b: (0, 0)),
            pl.BlockSpec((1, HKp), lambda b: (0, 0)),
            pl.BlockSpec((G, HKp), lambda b: (0, 0)),
            pl.BlockSpec((1, G * Qp), lambda b: (0, 0)),
        ],
        out_specs=[
            pl.BlockSpec((Bt, G, VQp), lambda b: (b, 0, 0)),
            pl.BlockSpec((Bt, G, VQp), lambda b: (b, 0, 0)),
        ],
    )

    # Cost estimate so XLA schedules around a weight-DMA / writeback-heavy custom call.
    flops = 2 * Bp * (Vp * Dv * HKp + Qp * Dq * HKp + G * Vp * Qp * HKp)
    bytes_accessed = ((Bp * (Vp * Dv + Qp * Dq) + (Dv + Dq) * HKp) * itemsize
                      + (2 * HKp + G * HKp + G * Qp) * 4
                      + 2 * Bp * G * VQp * 4)
    cost = pl.CostEstimate(flops=flops, transcendentals=Bp * G * VQp,
                           bytes_accessed=bytes_accessed)

    vmem_needed = kernel_vmem_bytes(Bt) + (4 << 20)
    vmem_limit = int(min(max(vmem_needed, 32 << 20), vmem_budget))

    p, logits = pl.pallas_call(
        bi_attention_kernel,
        out_shape=out_shape,
        grid_spec=grid_spec,
        compiler_params=pltpu.CompilerParams(
            dimension_semantics=("parallel",),
            vmem_limit_bytes=vmem_limit),
        cost_estimate=cost,
    )(v_c, q_c, wv_c, bv32, wq_c, bq32, hmat32, hb_lanes)

    p = p[:B].reshape(B, G, Vp, Qp)[:, :, :V, :Q]
    logits = logits[:B].reshape(B, G, Vp, Qp)[:, :, :V, :Q]
    return p, logits


def init_params(key, x_dim, y_dim, z_dim, glimpse, k=3):
    """Deterministic synthetic parameters; weight_norm(dim=None) folded into
    effective weights: w_eff = g * w / ||w||_F  (PyTorch inits g = ||w||)."""
    hk = z_dim * k
    ks = jax.random.split(key, 6)

    wv_raw = jax.random.normal(ks[0], (hk, x_dim), jnp.float32) * 0.1   # nn.Linear weight [out,in]
    bv = jax.random.normal(ks[1], (hk,), jnp.float32) * 0.1
    wq_raw = jax.random.normal(ks[2], (hk, y_dim), jnp.float32) * 0.1
    bq = jax.random.normal(ks[3], (hk,), jnp.float32) * 0.1
    hmat_raw = jax.random.normal(ks[4], (1, glimpse, 1, hk), jnp.float32)   # .normal_()
    hbias = jax.random.normal(ks[5], (1, glimpse, 1, 1), jnp.float32)       # .normal_()

    def wn(w):  # weight_norm with dim=None, g initialized to ||w||_F
        g = jnp.linalg.norm(w)
        return g * w / jnp.linalg.norm(w)

    wv_eff = wn(wv_raw)
    wq_eff = wn(wq_raw)
    hmat_eff = wn(hmat_raw)   # BiAttention wraps BCNet's h_mat in weight_norm

    # Kernel layout
    wv = wv_eff.T                                 # [Dv, HK]
    wq = wq_eff.T                                 # [Dq, HK]
    bv = bv.reshape(1, hk)
    bq = bq.reshape(1, hk)
    hmat = hmat_eff.reshape(glimpse, hk)          # [G, HK]
    hbias = hbias.reshape(glimpse, 1)             # [G, 1]
    return wv, bv, wq, bq, hmat, hbias


def reference(v, q, wv, bv, wq, bq, hmat, hbias, *, mxu_dtype=jnp.float32):
    """Pure-JAX reference mirroring the PyTorch forward.  Uses the (exact)
    bilinear identity (v*h_g)@q^T == v@(q*h_g)^T; `mxu_dtype` sets the matmul
    operand dtype (f32 accumulation) to match the kernel's MXU path."""
    cd = mxu_dtype
    v_feat = jnp.maximum(
        jnp.einsum('bvd,dh->bvh', v.astype(cd), wv.astype(cd),
                   preferred_element_type=jnp.float32) + bv, 0.0)        # [B,V,HK]
    q_feat = jnp.maximum(
        jnp.einsum('bqd,dh->bqh', q.astype(cd), wq.astype(cd),
                   preferred_element_type=jnp.float32) + bq, 0.0)        # [B,Q,HK]
    qs = q_feat[:, None, :, :] * hmat[None, :, None, :]                  # [B,G,Q,HK] f32
    logits = jnp.einsum('bvh,bgqh->bgvq', v_feat.astype(cd), qs.astype(cd),
                        preferred_element_type=jnp.float32)
    logits = logits + hbias[None, :, :, None]
    mask = (jnp.abs(v).sum(-1) == 0.0)[:, None, :, None]                 # [B,1,V,1]
    logits = jnp.where(mask, -jnp.inf, logits)
    B, G, V, Q = logits.shape
    p = jax.nn.softmax(logits.reshape(B, G, V * Q), axis=2).reshape(B, G, V, Q)
    return p, logits


if __name__ == "__main__":
    # Module hyperparameters (small, consistent with BiAttention/BCNet k=3)
    x_dim, y_dim, z_dim, glimpse, k = 16, 24, 32, 4, 3
    B, V, Q = 2, 8, 6

    key = jax.random.PRNGKey(0)
    kp, kv, kq = jax.random.split(key, 3)

    wv, bv, wq, bq, hmat, hbias = init_params(kp, x_dim, y_dim, z_dim, glimpse, k)

    v = jax.random.normal(kv, (B, V, x_dim), jnp.float32)
    v = v.at[0, 3, :].set(0.0)   # exercise the v_mask branch
    q = jax.random.normal(kq, (B, Q, y_dim), jnp.float32)

    # f32 MXU path: matches the f32 (PyTorch-equivalent) reference tightly.
    p32, lg32 = bi_attention(v, q, wv, bv, wq, bq, hmat, hbias,
                             mxu_dtype=jnp.float32)
    jax.block_until_ready((p32, lg32))
    p_ref, lg_ref = reference(v, q, wv, bv, wq, bq, hmat, hbias,
                              mxu_dtype=jnp.float32)
    assert p32.shape == (B, glimpse, V, Q) and lg32.shape == (B, glimpse, V, Q)
    assert jnp.allclose(lg32, lg_ref, rtol=1e-5, atol=1e-5)
    # p uses approx reciprocal + one Newton step (~1e-6 relative error).
    assert jnp.allclose(p32, p_ref, rtol=1e-4, atol=1e-5)

    # bf16 MXU path (production default): compare against a bf16-operand reference.
    pbf, lgbf = bi_attention(v, q, wv, bv, wq, bq, hmat, hbias,
                             mxu_dtype=jnp.bfloat16)
    jax.block_until_ready((pbf, lgbf))
    p_refb, lg_refb = reference(v, q, wv, bv, wq, bq, hmat, hbias,
                                mxu_dtype=jnp.bfloat16)
    assert jnp.allclose(pbf, p_refb, rtol=5e-3, atol=5e-3)
    assert jnp.allclose(lgbf, lg_refb, rtol=5e-3, atol=5e-3)

    print("KERNEL_OK")
</pallas_src>

<mosaic_0001>
module attributes {stable_mosaic.version = 11 : i64} {
  func.func @bi_attention_kernel(%arg0: i32, %arg1: memref<1x8x16xf32, #tpu.memory_space<vmem>>, %arg2: memref<1x16x24xf32, #tpu.memory_space<vmem>>, %arg3: memref<16x128xf32, #tpu.memory_space<vmem>>, %arg4: memref<1x128xf32, #tpu.memory_space<vmem>>, %arg5: memref<24x128xf32, #tpu.memory_space<vmem>>, %arg6: memref<1x128xf32, #tpu.memory_space<vmem>>, %arg7: memref<4x128xf32, #tpu.memory_space<vmem>>, %arg8: memref<1x64xf32, #tpu.memory_space<vmem>>, %arg9: memref<1x4x128xf32, #tpu.memory_space<vmem>>, %arg10: memref<1x4x128xf32, #tpu.memory_space<vmem>>) attributes {dimension_semantics = [#tpu.dimension_semantics<parallel>], iteration_bounds = array<i64: 2>, scalar_prefetch = 0 : i64, scratch_operands = 0 : i64, tpu.core_type = #tpu.core_type<tc>, window_params = [{transform_indices = @transform_0, window_bounds = array<i64: 1, 8, 16>}, {transform_indices = @transform_1, window_bounds = array<i64: 1, 16, 24>}, {pipeline_mode = #tpu.pipeline_mode<synchronous>, transform_indices = @transform_2, window_bounds = array<i64: 16, 128>}, {pipeline_mode = #tpu.pipeline_mode<synchronous>, transform_indices = @transform_3, window_bounds = array<i64: 1, 128>}, {pipeline_mode = #tpu.pipeline_mode<synchronous>, transform_indices = @transform_4, window_bounds = array<i64: 24, 128>}, {pipeline_mode = #tpu.pipeline_mode<synchronous>, transform_indices = @transform_5, window_bounds = array<i64: 1, 128>}, {pipeline_mode = #tpu.pipeline_mode<synchronous>, transform_indices = @transform_6, window_bounds = array<i64: 4, 128>}, {pipeline_mode = #tpu.pipeline_mode<synchronous>, transform_indices = @transform_7, window_bounds = array<i64: 1, 64>}, {transform_indices = @transform_8, window_bounds = array<i64: 1, 4, 128>}, {transform_indices = @transform_9, window_bounds = array<i64: 1, 4, 128>}]} {
    %c0 = arith.constant 0 : index
    %c0_0 = arith.constant 0 : index
    %c0_1 = arith.constant 0 : index
    %0 = vector.load %arg1[%c0, %c0_0, %c0_1] : memref<1x8x16xf32, #tpu.memory_space<vmem>>, vector<1x8x16xf32>
    %c0_2 = arith.constant 0 : index
    %c0_3 = arith.constant 0 : index
    %c0_4 = arith.constant 0 : index
    %1 = vector.load %arg2[%c0_2, %c0_3, %c0_4] : memref<1x16x24xf32, #tpu.memory_space<vmem>>, vector<1x16x24xf32>
    %2 = vector.shape_cast %0 : vector<1x8x16xf32> to vector<8x16xf32>
    %c0_5 = arith.constant 0 : index
    %c0_6 = arith.constant 0 : index
    %3 = vector.load %arg3[%c0_5, %c0_6] : memref<16x128xf32, #tpu.memory_space<vmem>>, vector<16x128xf32>
    %cst = arith.constant dense<0.000000e+00> : vector<8x128xf32>
    %4 = tpu.matmul %2, %3, %cst {dimension_numbers = #tpu.dot_dimension_numbers<[1], [0], [0], [1], [0, 0, 1, 1], [], []>} : vector<8x16xf32>, vector<16x128xf32>, vector<8x128xf32> -> vector<8x128xf32>
    %c0_7 = arith.constant 0 : index
    %c0_8 = arith.constant 0 : index
    %5 = vector.load %arg4[%c0_7, %c0_8] : memref<1x128xf32, #tpu.memory_space<vmem>>, vector<1x128xf32>
    %6 = vector.broadcast %5 : vector<1x128xf32> to vector<8x128xf32>
    %7 = arith.addf %4, %6 : vector<8x128xf32>
    %cst_9 = arith.constant 0.000000e+00 : f32
    %8 = vector.broadcast %cst_9 : f32 to vector<8x128xf32>
    %9 = arith.maximumf %7, %8 : vector<8x128xf32>
    %10 = vector.shape_cast %1 : vector<1x16x24xf32> to vector<16x24xf32>
    %c0_10 = arith.constant 0 : index
    %c0_11 = arith.constant 0 : index
    %11 = vector.load %arg5[%c0_10, %c0_11] : memref<24x128xf32, #tpu.memory_space<vmem>>, vector<24x128xf32>
    %cst_12 = arith.constant dense<0.000000e+00> : vector<16x128xf32>
    %12 = tpu.matmul %10, %11, %cst_12 {dimension_numbers = #tpu.dot_dimension_numbers<[1], [0], [0], [1], [0, 0, 1, 1], [], []>} : vector<16x24xf32>, vector<24x128xf32>, vector<16x128xf32> -> vector<16x128xf32>
    %c0_13 = arith.constant 0 : index
    %c0_14 = arith.constant 0 : index
    %13 = vector.load %arg6[%c0_13, %c0_14] : memref<1x128xf32, #tpu.memory_space<vmem>>, vector<1x128xf32>
    %14 = vector.broadcast %13 : vector<1x128xf32> to vector<16x128xf32>
    %15 = arith.addf %12, %14 : vector<16x128xf32>
    %cst_15 = arith.constant 0.000000e+00 : f32
    %16 = vector.broadcast %cst_15 : f32 to vector<16x128xf32>
    %17 = arith.maximumf %15, %16 : vector<16x128xf32>
    %18 = vector.shape_cast %17 : vector<16x128xf32> to vector<1x16x128xf32>
    %c0_16 = arith.constant 0 : index
    %c0_17 = arith.constant 0 : index
    %19 = vector.load %arg7[%c0_16, %c0_17] : memref<4x128xf32, #tpu.memory_space<vmem>>, vector<1x128xf32>
    %20 = vector.shape_cast %19 : vector<1x128xf32> to vector<1x1x128xf32>
    %21 = vector.broadcast %20 : vector<1x1x128xf32> to vector<1x16x128xf32>
    %22 = arith.mulf %18, %21 : vector<1x16x128xf32>
    %c1 = arith.constant 1 : index
    %c0_18 = arith.constant 0 : index
    %23 = vector.load %arg7[%c1, %c0_18] : memref<4x128xf32, #tpu.memory_space<vmem>>, vector<1x128xf32>
    %24 = vector.shape_cast %23 : vector<1x128xf32> to vector<1x1x128xf32>
    %25 = vector.broadcast %24 : vector<1x1x128xf32> to vector<1x16x128xf32>
    %26 = arith.mulf %18, %25 : vector<1x16x128xf32>
    %c2 = arith.constant 2 : index
    %c0_19 = arith.constant 0 : index
    %27 = vector.load %arg7[%c2, %c0_19] : memref<4x128xf32, #tpu.memory_space<vmem>>, vector<1x128xf32>
    %28 = vector.shape_cast %27 : vector<1x128xf32> to vector<1x1x128xf32>
    %29 = vector.broadcast %28 : vector<1x1x128xf32> to vector<1x16x128xf32>
    %30 = arith.mulf %18, %29 : vector<1x16x128xf32>
    %c3 = arith.constant 3 : index
    %c0_20 = arith.constant 0 : index
    %31 = vector.load %arg7[%c3, %c0_20] : memref<4x128xf32, #tpu.memory_space<vmem>>, vector<1x128xf32>
    %32 = vector.shape_cast %31 : vector<1x128xf32> to vector<1x1x128xf32>
    %33 = vector.broadcast %32 : vector<1x1x128xf32> to vector<1x16x128xf32>
    %34 = arith.mulf %18, %33 : vector<1x16x128xf32>
    %35 = tpu.concatenate %22, %26, %30, %34 in 1 : vector<1x16x128xf32>, vector<1x16x128xf32>, vector<1x16x128xf32>, vector<1x16x128xf32> -> vector<1x64x128xf32>
    %36 = vector.shape_cast %9 : vector<8x128xf32> to vector<1x8x128xf32>
    %cst_21 = arith.constant dense<0.000000e+00> : vector<1x8x64xf32>
    %37 = tpu.matmul %36, %35, %cst_21 {dimension_numbers = #tpu.dot_dimension_numbers<[2], [2], [1], [1], [0, 0, 0, 1, 1, 1], [0], [0]>} : vector<1x8x128xf32>, vector<1x64x128xf32>, vector<1x8x64xf32> -> vector<1x8x64xf32>
    %c0_22 = arith.constant 0 : index
    %c0_23 = arith.constant 0 : index
    %38 = vector.load %arg8[%c0_22, %c0_23] : memref<1x64xf32, #tpu.memory_space<vmem>>, vector<1x64xf32>
    %39 = vector.shape_cast %38 : vector<1x64xf32> to vector<1x1x64xf32>
    %40 = vector.broadcast %39 : vector<1x1x64xf32> to vector<1x8x64xf32>
    %41 = arith.addf %37, %40 : vector<1x8x64xf32>
    %42 = math.absf %0 : vector<1x8x16xf32>
    %cst_24 = arith.constant dense<0.000000e+00> : vector<1x8xf32>
    %43 = vector.multi_reduction <add>, %42, %cst_24 [2] : vector<1x8x16xf32> to vector<1x8xf32>
    %44 = vector.shape_cast %43 : vector<1x8xf32> to vector<1x8x1xf32>
    %cst_25 = arith.constant 0.000000e+00 : f32
    %45 = vector.broadcast %cst_25 : f32 to vector<1x8x1xf32>
    %46 = arith.cmpf oeq, %44, %45 : vector<1x8x1xf32>
    %cst_26 = arith.constant 0xFF800000 : f32
    %47 = vector.shape_cast %46 : vector<1x8x1xi1> to vector<1x8x1xi1>
    %48 = vector.broadcast %47 : vector<1x8x1xi1> to vector<1x8x64xi1>
    %49 = vector.broadcast %cst_26 : f32 to vector<1x8x64xf32>
    %50 = arith.select %48, %49, %41 : vector<1x8x64xi1>, vector<1x8x64xf32>
    %51 = vector.extract_strided_slice %50 {offsets = [0, 0, 0], sizes = [1, 8, 16], strides = [1, 1, 1]} : vector<1x8x64xf32> to vector<1x8x16xf32>
    %52 = vector.shape_cast %51 : vector<1x8x16xf32> to vector<1x1x128xf32>
    %53 = vector.extract_strided_slice %50 {offsets = [0, 0, 16], sizes = [1, 8, 16], strides = [1, 1, 1]} : vector<1x8x64xf32> to vector<1x8x16xf32>
    %54 = vector.shape_cast %53 : vector<1x8x16xf32> to vector<1x1x128xf32>
    %55 = vector.extract_strided_slice %50 {offsets = [0, 0, 32], sizes = [1, 8, 16], strides = [1, 1, 1]} : vector<1x8x64xf32> to vector<1x8x16xf32>
    %56 = vector.shape_cast %55 : vector<1x8x16xf32> to vector<1x1x128xf32>
    %57 = vector.extract_strided_slice %50 {offsets = [0, 0, 48], sizes = [1, 8, 16], strides = [1, 1, 1]} : vector<1x8x64xf32> to vector<1x8x16xf32>
    %58 = vector.shape_cast %57 : vector<1x8x16xf32> to vector<1x1x128xf32>
    %59 = tpu.concatenate %52, %54, %56, %58 in 1 : vector<1x1x128xf32>, vector<1x1x128xf32>, vector<1x1x128xf32>, vector<1x1x128xf32> -> vector<1x4x128xf32>
    %c0_27 = arith.constant 0 : index
    %c0_28 = arith.constant 0 : index
    %c0_29 = arith.constant 0 : index
    %60 = vector.load %arg10[%c0_27, %c0_28, %c0_29] : memref<1x4x128xf32, #tpu.memory_space<vmem>>, vector<1x4x128xf32>
    tpu.vector_store %arg10[%c0_27, %c0_28, %c0_29], %59 {strides = array<i32>} : memref<1x4x128xf32, #tpu.memory_space<vmem>>, vector<1x4x128xf32>,
    %cst_30 = arith.constant dense<0xFF800000> : vector<1x4xf32>
    %61 = vector.multi_reduction <maximumf>, %59, %cst_30 [2] : vector<1x4x128xf32> to vector<1x4xf32>
    %62 = vector.shape_cast %61 : vector<1x4xf32> to vector<1x4x1xf32>
    %63 = vector.broadcast %62 : vector<1x4x1xf32> to vector<1x4x128xf32>
    %64 = arith.subf %59, %63 : vector<1x4x128xf32>
    %65 = math.exp %64 : vector<1x4x128xf32>
    %cst_31 = arith.constant dense<0.000000e+00> : vector<1x4xf32>
    %66 = vector.multi_reduction <add>, %65, %cst_31 [2] : vector<1x4x128xf32> to vector<1x4xf32>
    %67 = vector.shape_cast %66 : vector<1x4xf32> to vector<1x4x1xf32>
    %68 = tpu.reciprocal %67 {approx = true} : vector<1x4x1xf32> -> vector<1x4x1xf32>
    %69 = arith.mulf %67, %68 : vector<1x4x1xf32>
    %cst_32 = arith.constant 2.000000e+00 : f32
    %70 = vector.broadcast %cst_32 : f32 to vector<1x4x1xf32>
    %71 = arith.subf %70, %69 : vector<1x4x1xf32>
    %72 = arith.mulf %68, %71 : vector<1x4x1xf32>
    %73 = vector.broadcast %72 : vector<1x4x1xf32> to vector<1x4x128xf32>
    %74 = arith.mulf %65, %73 : vector<1x4x128xf32>
    %c0_33 = arith.constant 0 : index
    %c0_34 = arith.constant 0 : index
    %c0_35 = arith.constant 0 : index
    %75 = vector.load %arg9[%c0_33, %c0_34, %c0_35] : memref<1x4x128xf32, #tpu.memory_space<vmem>>, vector<1x4x128xf32>
    tpu.vector_store %arg9[%c0_33, %c0_34, %c0_35], %74 {strides = array<i32>} : memref<1x4x128xf32, #tpu.memory_space<vmem>>, vector<1x4x128xf32>,
    return
  }
  func.func @transform_0(%arg0: i32) -> (i32, i32, i32) {
    %c0_i32 = arith.constant 0 : i32
    %c0_i32_0 = arith.constant 0 : i32
    %c0_i32_1 = arith.constant 0 : i32
    return %arg0, %c0_i32, %c0_i32_0 : i32, i32, i32
  }
  func.func @transform_1(%arg0: i32) -> (i32, i32, i32) {
    %c0_i32 = arith.constant 0 : i32
    %c0_i32_0 = arith.constant 0 : i32
    %c0_i32_1 = arith.constant 0 : i32
    return %arg0, %c0_i32, %c0_i32_0 : i32, i32, i32
  }
  func.func @transform_2(%arg0: i32) -> (i32, i32) {
    %c0_i32 = arith.constant 0 : i32
    %c0_i32_0 = arith.constant 0 : i32
    %c0_i32_1 = arith.constant 0 : i32
    return %c0_i32, %c0_i32_0 : i32, i32
  }
  func.func @transform_3(%arg0: i32) -> (i32, i32) {
    %c0_i32 = arith.constant 0 : i32
    %c0_i32_0 = arith.constant 0 : i32
    %c0_i32_1 = arith.constant 0 : i32
    return %c0_i32, %c0_i32_0 : i32, i32
  }
  func.func @transform_4(%arg0: i32) -> (i32, i32) {
    %c0_i32 = arith.constant 0 : i32
    %c0_i32_0 = arith.constant 0 : i32
    %c0_i32_1 = arith.constant 0 : i32
    return %c0_i32, %c0_i32_0 : i32, i32
  }
  func.func @transform_5(%arg0: i32) -> (i32, i32) {
    %c0_i32 = arith.constant 0 : i32
    %c0_i32_0 = arith.constant 0 : i32
    %c0_i32_1 = arith.constant 0 : i32
    return %c0_i32, %c0_i32_0 : i32, i32
  }
  func.func @transform_6(%arg0: i32) -> (i32, i32) {
    %c0_i32 = arith.constant 0 : i32
    %c0_i32_0 = arith.constant 0 : i32
    %c0_i32_1 = arith.constant 0 : i32
    return %c0_i32, %c0_i32_0 : i32, i32
  }
  func.func @transform_7(%arg0: i32) -> (i32, i32) {
    %c0_i32 = arith.constant 0 : i32
    %c0_i32_0 = arith.constant 0 : i32
    %c0_i32_1 = arith.constant 0 : i32
    return %c0_i32, %c0_i32_0 : i32, i32
  }
  func.func @transform_8(%arg0: i32) -> (i32, i32, i32) {
    %c0_i32 = arith.constant 0 : i32
    %c0_i32_0 = arith.constant 0 : i32
    %c0_i32_1 = arith.constant 0 : i32
    return %arg0, %c0_i32, %c0_i32_0 : i32, i32, i32
  }
  func.func @transform_9(%arg0: i32) -> (i32, i32, i32) {
    %c0_i32 = arith.constant 0 : i32
    %c0_i32_0 = arith.constant 0 : i32
    %c0_i32_1 = arith.constant 0 : i32
    return %arg0, %c0_i32, %c0_i32_0 : i32, i32, i32
  }
}

</mosaic_0001>

<llo_original>
// kernel: tpu_custom_call.1
$region0: #{tpu_custom_call.1}
  #allocation0 [shape = 'u32[]', space=smem, size = 0x4, offset = 0x4, fixed_abs, tag = 'smem constant byte address 0x4 - core index']
  #allocation1 [shape = 'u32[144,128]{1,0:T(1,128)}', space=vmem, size = 0x12000, scoped, tag = 'internal scratch']
  %s0 = inlined_call_operand.hbm [shape: f32[2,8,16], index: 0, kind: input, shape index: {}]
  %s1 = inlined_call_operand.hbm [shape: f32[2,16,24], index: 1, kind: input, shape index: {}]
  %s2 = inlined_call_operand.hbm [shape: f32[16,128], index: 2, kind: input, shape index: {}]
  %s3 = inlined_call_operand.vmem [shape: f32[1,128], index: 3, kind: input, shape index: {}]
  %s4 = inlined_call_operand.hbm [shape: f32[24,128], index: 4, kind: input, shape index: {}]
  %s5 = inlined_call_operand.vmem [shape: f32[1,128], index: 5, kind: input, shape index: {}]
  %s6 = inlined_call_operand.vmem [shape: f32[4,128], index: 6, kind: input, shape index: {}]
  %s7 = inlined_call_operand.vmem [shape: f32[1,64], index: 7, kind: input, shape index: {}]
  %s8 = inlined_call_operand.hbm [shape: f32[2,4,128], index: 8, kind: output, shape index: {0}]
  %s9 = inlined_call_operand.hbm [shape: f32[2,4,128], index: 9, kind: output, shape index: {1}]
  %10 = xla_tuple %s8, %s9
  %s11 = sld [smem:[#allocation0]]
  $region89: #{tpu_custom_call.1} parent=0
    _
  %s13 = ssub.s32 1, %s11
  %s14 = scalar_select 0, %s13, %s11
  $region1: #{tpu_custom_call.1} parent=0
    #allocation2 [shape = 'u8[8192]{0}', space=vmem, size = 0x2000, scoped, tag = 'input window, operand 0']
    #allocation3 [shape = 's32[2]{0}', space=sflag, size = 0x8, scoped, tag = 'scoped memory for tpu_custom_call.1']
    #allocation4 [shape = 's32[2]{0}', space=sflag, size = 0x8, scoped, tag = 'scoped memory for tpu_custom_call.1']
    #allocation5 [shape = 'u8[16384]{0}', space=vmem, size = 0x4000, scoped, tag = 'input window, operand 1']
    #allocation6 [shape = 's32[2]{0}', space=sflag, size = 0x8, scoped, tag = 'scoped memory for tpu_custom_call.1']
    #allocation7 [shape = 'u8[8192]{0}', space=vmem, size = 0x2000, scoped, tag = 'input window, operand 2, single buffered']
    #allocation8 [shape = 'u8[12288]{0}', space=vmem, size = 0x3000, scoped, tag = 'input window, operand 4, single buffered']
    #allocation9 [shape = 's32[1]{0}', space=sflag, size = 0x4, scoped, tag = 'scoped memory for tpu_custom_call.1']
    #allocation10 [shape = 'u8[4096]{0}', space=vmem, size = 0x1000, scoped, tag = 'output window, operand 0']
    #allocation11 [shape = 'u8[4096]{0}', space=vmem, size = 0x1000, scoped, tag = 'output window, operand 1']
    #allocation12 [shape = 's32[2]{0}', space=sflag, size = 0x8, scoped, tag = 'scoped memory for tpu_custom_call.1']
    %15 = vsyncpa [#allocation3], 0
    %s16 = scalar_lea.sflag [#allocation3], 1
    %17 = vsyncpa %s16, 0
    %18 = vsyncpa [#allocation6], 0
    %s19 = scalar_lea.sflag [#allocation6], 1
    %20 = vsyncpa %s19, 0
    %21 = vsyncpa [#allocation9], 0
    %22 = vsyncpa [#allocation4], 0
    %s23 = scalar_lea.sflag [#allocation4], 1
    %24 = vsyncpa %s23, 0
    %25 = vsyncpa [#allocation12], 0
    %s26 = scalar_lea.sflag [#allocation12], 1
    %27 = vsyncpa %s26, 0
    loop: start=0, step=1, limit=4
    $region2: #{tpu_custom_call.1} parent=1 // loop_pre_header
      _
    $region3: #{tpu_custom_call.1} parent=1 // loop_header
      %s29 = sphi 0, %s33
      %p30 = scmp.ge.s32.totalorder %s29, 4
      %s39 = sphi 0, %s41
      %s42 = sphi 0, %s39
      %s43 = sphi 0, %s42
      %s59 = sphi 0, %s43
      %s65 = sphi 0, %s67
      %s68 = sphi 0, %s65
      %s69 = sphi 0, %s68
      %s85 = sphi 0, %s69
      %s89 = sphi 0, %s89
      %s91 = sphi 0, %s89
      %s92 = sphi 0, %s91
      %s106 = sphi 0, %s92
      %s110 = sphi 0, %s110
      %s112 = sphi 0, %s110
      %s113 = sphi 0, %s112
      %s127 = sphi 0, %s113
      %s131 = sphi 0, %s131
      %s133 = sphi 0, %s131
      %s134 = sphi 0, %s133
      %s148 = sphi 0, %s134
      %s152 = sphi 0, %s152
      %s154 = sphi 0, %s152
      %s155 = sphi 0, %s154
      %s169 = sphi 0, %s155
      %s173 = sphi 0, %s173
      %s175 = sphi 0, %s173
      %s176 = sphi 0, %s175
      %s190 = sphi 0, %s176
      %s194 = sphi 0, %s194
      %s196 = sphi 0, %s194
      %s197 = sphi 0, %s196
      %s211 = sphi 0, %s197
      %s217 = sphi 0, %s219
      %s220 = sphi 0, %s217
      %s221 = sphi 0, %s220
      %s237 = sphi 0, %s221
      %s243 = sphi 0, %s245
      %s246 = sphi 0, %s243
      %s247 = sphi 0, %s246
      %s263 = sphi 0, %s247
    $region4: #{tpu_custom_call.1} parent=1 // loop_header_branch
      %32 = sbr.rel (%p30) target = $region8
    $region5: #{tpu_custom_call.1} parent=1 // loop_body
      %s34 = ssub.s32 %s29, 1
      %s35 = ssub.s32 %s29, 2
      %s36 = sadd.s32 %s29, 1
      %s37 = ssub.s32 %s29, %s36
      %p38 = scmp.eq.s32.totalorder %s37, 0
      %s40 = sadd.s32 %s39, 1
      %s41 = scalar_select %p38, %s39, %s40
      %p44 = pneg %p38
      %p45 = scmp.eq.s32.totalorder %s29, 1
      %p46 = por %p44, %p45
      %p47 = scmp.ne.s32.totalorder %s39, %s42
      %p48 = scmp.eq.s32.totalorder %s29, 0
      %p49 = por %p47, %p48
      %p50 = scmp.ne.s32.totalorder %s39, %s42
      %p51 = scmp.eq.s32.totalorder %s34, 1
      %p52 = por %p50, %p51
      %p53 = scmp.ne.s32.totalorder %s42, %s43
      %p54 = scmp.eq.s32.totalorder %s34, 0
      %p55 = por %p53, %p54
      %p56 = scmp.ne.s32.totalorder %s42, %s43
      %p57 = scmp.eq.s32.totalorder %s35, 1
      %p58 = por %p56, %p57
      %p60 = scmp.ne.s32.totalorder %s43, %s59
      %p61 = scmp.eq.s32.totalorder %s35, 0
      %p62 = por %p60, %p61
      %s63 = ssub.s32 %s29, %s36
      %p64 = scmp.eq.s32.totalorder %s63, 0
      %s66 = sadd.s32 %s65, 1
      %s67 = scalar_select %p64, %s65, %s66
      %p70 = pneg %p64
      %p71 = scmp.eq.s32.totalorder %s29, 1
      %p72 = por %p70, %p71
      %p73 = scmp.ne.s32.totalorder %s65, %s68
      %p74 = scmp.eq.s32.totalorder %s29, 0
      %p75 = por %p73, %p74
      %p76 = scmp.ne.s32.totalorder %s65, %s68
      %p77 = scmp.eq.s32.totalorder %s34, 1
      %p78 = por %p76, %p77
      %p79 = scmp.ne.s32.totalorder %s68, %s69
      %p80 = scmp.eq.s32.totalorder %s34, 0
      %p81 = por %p79, %p80
      %p82 = scmp.ne.s32.totalorder %s68, %s69
      %p83 = scmp.eq.s32.totalorder %s35, 1
      %p84 = por %p82, %p83
      %p86 = scmp.ne.s32.totalorder %s69, %s85
      %p87 = scmp.eq.s32.totalorder %s35, 0
      %p88 = por %p86, %p87
      %s90 = sadd.s32 %s89, 1
      %p93 = scmp.eq.s32.totalorder %s29, 1
      %p94 = scmp.ne.s32.totalorder %s89, %s91
      %p95 = scmp.eq.s32.totalorder %s29, 0
      %p96 = por %p94, %p95
      %p97 = scmp.ne.s32.totalorder %s89, %s91
      %p98 = scmp.eq.s32.totalorder %s34, 1
      %p99 = por %p97, %p98
      %p100 = scmp.ne.s32.totalorder %s91, %s92
      %p101 = scmp.eq.s32.totalorder %s34, 0
      %p102 = por %p100, %p101
      %p103 = scmp.ne.s32.totalorder %s91, %s92
      %p104 = scmp.eq.s32.totalorder %s35, 1
      %p105 = por %p103, %p104
      %p107 = scmp.ne.s32.totalorder %s92, %s106
      %p108 = scmp.eq.s32.totalorder %s35, 0
      %p109 = por %p107, %p108
      %s111 = sadd.s32 %s110, 1
      %p114 = scmp.eq.s32.totalorder %s29, 1
      %p115 = scmp.ne.s32.totalorder %s110, %s112
      %p116 = scmp.eq.s32.totalorder %s29, 0
      %p117 = por %p115, %p116
      %p118 = scmp.ne.s32.totalorder %s110, %s112
      %p119 = scmp.eq.s32.totalorder %s34, 1
      %p120 = por %p118, %p119
      %p121 = scmp.ne.s32.totalorder %s112, %s113
      %p122 = scmp.eq.s32.totalorder %s34, 0
      %p123 = por %p121, %p122
      %p124 = scmp.ne.s32.totalorder %s112, %s113
      %p125 = scmp.eq.s32.totalorder %s35, 1
      %p126 = por %p124, %p125
      %p128 = scmp.ne.s32.totalorder %s113, %s127
      %p129 = scmp.eq.s32.totalorder %s35, 0
      %p130 = por %p128, %p129
      %s132 = sadd.s32 %s131, 1
      %p135 = scmp.eq.s32.totalorder %s29, 1
      %p136 = scmp.ne.s32.totalorder %s131, %s133
      %p137 = scmp.eq.s32.totalorder %s29, 0
      %p138 = por %p136, %p137
      %p139 = scmp.ne.s32.totalorder %s131, %s133
      %p140 = scmp.eq.s32.totalorder %s34, 1
      %p141 = por %p139, %p140
      %p142 = scmp.ne.s32.totalorder %s133, %s134
      %p143 = scmp.eq.s32.totalorder %s34, 0
      %p144 = por %p142, %p143
      %p145 = scmp.ne.s32.totalorder %s133, %s134
      %p146 = scmp.eq.s32.totalorder %s35, 1
      %p147 = por %p145, %p146
      %p149 = scmp.ne.s32.totalorder %s134, %s148
      %p150 = scmp.eq.s32.totalorder %s35, 0
      %p151 = por %p149, %p150
      %s153 = sadd.s32 %s152, 1
      %p156 = scmp.eq.s32.totalorder %s29, 1
      %p157 = scmp.ne.s32.totalorder %s152, %s154
      %p158 = scmp.eq.s32.totalorder %s29, 0
      %p159 = por %p157, %p158
      %p160 = scmp.ne.s32.totalorder %s152, %s154
      %p161 = scmp.eq.s32.totalorder %s34, 1
      %p162 = por %p160, %p161
      %p163 = scmp.ne.s32.totalorder %s154, %s155
      %p164 = scmp.eq.s32.totalorder %s34, 0
      %p165 = por %p163, %p164
      %p166 = scmp.ne.s32.totalorder %s154, %s155
      %p167 = scmp.eq.s32.totalorder %s35, 1
      %p168 = por %p166, %p167
      %p170 = scmp.ne.s32.totalorder %s155, %s169
      %p171 = scmp.eq.s32.totalorder %s35, 0
      %p172 = por %p170, %p171
      %s174 = sadd.s32 %s173, 1
      %p177 = scmp.eq.s32.totalorder %s29, 1
      %p178 = scmp.ne.s32.totalorder %s173, %s175
      %p179 = scmp.eq.s32.totalorder %s29, 0
      %p180 = por %p178, %p179
      %p181 = scmp.ne.s32.totalorder %s173, %s175
      %p182 = scmp.eq.s32.totalorder %s34, 1
      %p183 = por %p181, %p182
      %p184 = scmp.ne.s32.totalorder %s175, %s176
      %p185 = scmp.eq.s32.totalorder %s34, 0
      %p186 = por %p184, %p185
      %p187 = scmp.ne.s32.totalorder %s175, %s176
      %p188 = scmp.eq.s32.totalorder %s35, 1
      %p189 = por %p187, %p188
      %p191 = scmp.ne.s32.totalorder %s176, %s190
      %p192 = scmp.eq.s32.totalorder %s35, 0
      %p193 = por %p191, %p192
      %s195 = sadd.s32 %s194, 1
      %p198 = scmp.eq.s32.totalorder %s29, 1
      %p199 = scmp.ne.s32.totalorder %s194, %s196
      %p200 = scmp.eq.s32.totalorder %s29, 0
      %p201 = por %p199, %p200
      %p202 = scmp.ne.s32.totalorder %s194, %s196
      %p203 = scmp.eq.s32.totalorder %s34, 1
      %p204 = por %p202, %p203
      %p205 = scmp.ne.s32.totalorder %s196, %s197
      %p206 = scmp.eq.s32.totalorder %s34, 0
      %p207 = por %p205, %p206
      %p208 = scmp.ne.s32.totalorder %s196, %s197
      %p209 = scmp.eq.s32.totalorder %s35, 1
      %p210 = por %p208, %p209
      %p212 = scmp.ne.s32.totalorder %s197, %s211
      %p213 = scmp.eq.s32.totalorder %s35, 0
      %p214 = por %p212, %p213
      %s215 = ssub.s32 %s29, %s36
      %p216 = scmp.eq.s32.totalorder %s215, 0
      %s218 = sadd.s32 %s217, 1
      %s219 = scalar_select %p216, %s217, %s218
      %p222 = pneg %p216
      %p223 = scmp.eq.s32.totalorder %s29, 1
      %p224 = por %p222, %p223
      %p225 = scmp.ne.s32.totalorder %s217, %s220
      %p226 = scmp.eq.s32.totalorder %s29, 0
      %p227 = por %p225, %p226
      %p228 = scmp.ne.s32.totalorder %s217, %s220
      %p229 = scmp.eq.s32.totalorder %s34, 1
      %p230 = por %p228, %p229
      %p231 = scmp.ne.s32.totalorder %s220, %s221
      %p232 = scmp.eq.s32.totalorder %s34, 0
      %p233 = por %p231, %p232
      %p234 = scmp.ne.s32.totalorder %s220, %s221
      %p235 = scmp.eq.s32.totalorder %s35, 1
      %p236 = por %p234, %p235
      %p238 = scmp.ne.s32.totalorder %s221, %s237
      %p239 = scmp.eq.s32.totalorder %s35, 0
      %p240 = por %p238, %p239
      %s241 = ssub.s32 %s29, %s36
      %p242 = scmp.eq.s32.totalorder %s241, 0
      %s244 = sadd.s32 %s243, 1
      %s245 = scalar_select %p242, %s243, %s244
      %p248 = pneg %p242
      %p249 = scmp.eq.s32.totalorder %s29, 1
      %p250 = por %p248, %p249
      %p251 = scmp.ne.s32.totalorder %s243, %s246
      %p252 = scmp.eq.s32.totalorder %s29, 0
      %p253 = por %p251, %p252
      %p254 = scmp.ne.s32.totalorder %s243, %s246
      %p255 = scmp.eq.s32.totalorder %s34, 1
      %p256 = por %p254, %p255
      %p257 = scmp.ne.s32.totalorder %s246, %s247
      %p258 = scmp.eq.s32.totalorder %s34, 0
      %p259 = por %p257, %p258
      %p260 = scmp.ne.s32.totalorder %s246, %s247
      %p261 = scmp.eq.s32.totalorder %s35, 1
      %p262 = por %p260, %p261
      %p264 = scmp.ne.s32.totalorder %s247, %s263
      %p265 = scmp.eq.s32.totalorder %s35, 0
      %p266 = por %p264, %p265
      %p267 = scmp.le.s32.totalorder 1, %s29
      %p268 = scmp.lt.s32.totalorder %s29, 3
      %p269 = pnand %p267, %p268
      %p270 = pneg %p269
      // Predicated region
      $region9: #{tpu_custom_call.1} parent=5 // pred_check
        _
      $region10: #{tpu_custom_call.1} parent=5 // pred_check_branch
        %272 = sbr.rel (%p269) target = $region12
      $region11: #{tpu_custom_call.1} parent=5 // pred_region
        %s273 = ssub.s32 %s29, 1
        // Predicated region
        $region13: #{tpu_custom_call.1} parent=11 // pred_check
          %p274 = pneg %p102
        $region14: #{tpu_custom_call.1} parent=11 // pred_check_branch
          %276 = sbr.rel (%p274) target = $region16
        $region15: #{tpu_custom_call.1} parent=11 // pred_region
          %s278 = ssub.s32 256, 256
          %279 = vsyncadd [#allocation6], %s278
          %s280 = sshll.u32 [#allocation7], 4
          %s281 = int_to_ptr.vmem [resolvable:$true] %s280
          %286 = dma.hbm_to_vmem [thread:$0]  %s2, 256, %s281, [#allocation6], 128, 128, 8
        $region16: #{tpu_custom_call.1} parent=11 // pred_fallthru
          _
        // Predicated region
        $region17: #{tpu_custom_call.1} parent=11 // pred_check
          %p287 = pneg %p123
        $region18: #{tpu_custom_call.1} parent=11 // pred_check_branch
          %289 = sbr.rel (%p287) target = $region20
        $region19: #{tpu_custom_call.1} parent=11 // pred_region
          _
        $region20: #{tpu_custom_call.1} parent=11 // pred_fallthru
          _
        // Predicated region
        $region21: #{tpu_custom_call.1} parent=11 // pred_check
          %p290 = pneg %p144
        $region22: #{tpu_custom_call.1} parent=11 // pred_check_branch
          %292 = sbr.rel (%p290) target = $region24
        $region23: #{tpu_custom_call.1} parent=11 // pred_region
          %s294 = ssub.s32 384, 384
          %295 = vsyncadd [#allocation9], %s294
          %s296 = sshll.u32 [#allocation8], 4
          %s297 = int_to_ptr.vmem [resolvable:$true] %s296
          %302 = dma.hbm_to_vmem [thread:$0]  %s4, 384, %s297, [#allocation9], 128, 128, 8
        $region24: #{tpu_custom_call.1} parent=11 // pred_fallthru
          _
        // Predicated region
        $region25: #{tpu_custom_call.1} parent=11 // pred_check
          %p303 = pneg %p165
        $region26: #{tpu_custom_call.1} parent=11 // pred_check_branch
          %305 = sbr.rel (%p303) target = $region28
        $region27: #{tpu_custom_call.1} parent=11 // pred_region
          _
        $region28: #{tpu_custom_call.1} parent=11 // pred_fallthru
          _
        // Predicated region
        $region29: #{tpu_custom_call.1} parent=11 // pred_check
          %p306 = pneg %p186
        $region30: #{tpu_custom_call.1} parent=11 // pred_check_branch
          %308 = sbr.rel (%p306) target = $region32
        $region31: #{tpu_custom_call.1} parent=11 // pred_region
          _
        $region32: #{tpu_custom_call.1} parent=11 // pred_fallthru
          _
        // Predicated region
        $region33: #{tpu_custom_call.1} parent=11 // pred_check
          %p309 = pneg %p207
        $region34: #{tpu_custom_call.1} parent=11 // pred_check_branch
          %311 = sbr.rel (%p309) target = $region36
        $region35: #{tpu_custom_call.1} parent=11 // pred_region
          _
        $region36: #{tpu_custom_call.1} parent=11 // pred_fallthru
          _
      $region12: #{tpu_custom_call.1} parent=5 // pred_fallthru
        _
      %p312 = scmp.lt.s32.totalorder %s29, 2
      // Predicated region
      $region37: #{tpu_custom_call.1} parent=5 // pred_check
        %p313 = pneg %p312
      $region38: #{tpu_custom_call.1} parent=5 // pred_check_branch
        %315 = sbr.rel (%p313) target = $region40
      $region39: #{tpu_custom_call.1} parent=5 // pred_region
        // Predicated region
        $region41: #{tpu_custom_call.1} parent=39 // pred_check
          %p316 = pneg %p49
        $region42: #{tpu_custom_call.1} parent=39 // pred_check_branch
          %318 = sbr.rel (%p316) target = $region44
        $region43: #{tpu_custom_call.1} parent=39 // pred_region
          %s319 = sand.u32 %s39, 1
          %s320 = scalar_lea.sflag [#allocation3], %s319
          %s321 = sand.u32 %s39, 1
          %s322 = smul.addr %s321, 8
          %s323 = scalar_lea.vmem [#allocation2], %s322
          %s325 = ssub.s32 128, 128
          %326 = vsyncadd %s320, %s325
          %s327 = smul.addr %s29, 128
          %s328 = scalar_lea.hbm %s0, %s327
          %s330 = sshll.u32 %s323, 4
          %s331 = int_to_ptr.vmem [resolvable:$true] %s330
          %333 = dma.hbm_to_vmem [thread:$0]  %s328, 128, %s331, %s320
        $region44: #{tpu_custom_call.1} parent=39 // pred_fallthru
          _
        // Predicated region
        $region45: #{tpu_custom_call.1} parent=39 // pred_check
          %p334 = pneg %p75
        $region46: #{tpu_custom_call.1} parent=39 // pred_check_branch
          %336 = sbr.rel (%p334) target = $region48
        $region47: #{tpu_custom_call.1} parent=39 // pred_region
          %s337 = sand.u32 %s29, 1
          %s338 = scalar_lea.sflag [#allocation6], %s337
          %s339 = sand.u32 %s65, 1
          %s340 = smul.addr %s339, 16
          %s341 = scalar_lea.vmem [#allocation5], %s340
          %s343 = ssub.s32 256, 256
          %344 = vsyncadd %s338, %s343
          %s345 = smul.addr %s29, 2
          %s346 = smul.addr %s345, 128
          %s347 = scalar_lea.hbm %s1, %s346
          %s348 = sshll.u32 %s341, 4
          %s349 = int_to_ptr.vmem [resolvable:$true] %s348
          %354 = dma.hbm_to_vmem [thread:$0]  %s347, 256, %s349, %s338, 128, 128, 8
        $region48: #{tpu_custom_call.1} parent=39 // pred_fallthru
          _
      $region40: #{tpu_custom_call.1} parent=5 // pred_fallthru
        _
      %p355 = scmp.le.s32.totalorder 1, %s29
      %p356 = scmp.lt.s32.totalorder %s29, 3
      %p357 = pnand %p355, %p356
      %p358 = pneg %p357
      // Predicated region
      $region49: #{tpu_custom_call.1} parent=5 // pred_check
        _
      $region50: #{tpu_custom_call.1} parent=5 // pred_check_branch
        %360 = sbr.rel (%p357) target = $region52
      $region51: #{tpu_custom_call.1} parent=5 // pred_region
        %s361 = ssub.s32 %s29, 1
        %s362 = sand.u32 %s42, 1
        %s363 = scalar_lea.sflag [#allocation3], %s362
        %s364 = sand.u32 %s42, 1
        %s365 = smul.addr %s364, 8
        %s366 = scalar_lea.vmem [#allocation2], %s365
        // Predicated region
        $region53: #{tpu_custom_call.1} parent=51 // pred_check
          %p367 = pneg %p55
        $region54: #{tpu_custom_call.1} parent=51 // pred_check_branch
          %369 = sbr.rel (%p367) target = $region56
        $region55: #{tpu_custom_call.1} parent=51 // pred_region
          %370 = dma.done %s363, 128
        $region56: #{tpu_custom_call.1} parent=51 // pred_fallthru
          _
        %s371 = sand.u32 %s34, 1
        %s372 = scalar_lea.sflag [#allocation6], %s371
        %s373 = sand.u32 %s68, 1
        %s374 = smul.addr %s373, 16
        %s375 = scalar_lea.vmem [#allocation5], %s374
        // Predicated region
        $region57: #{tpu_custom_call.1} parent=51 // pred_check
          %p376 = pneg %p81
        $region58: #{tpu_custom_call.1} parent=51 // pred_check_branch
          %378 = sbr.rel (%p376) target = $region60
        $region59: #{tpu_custom_call.1} parent=51 // pred_region
          %379 = dma.done %s372, 256
        $region60: #{tpu_custom_call.1} parent=51 // pred_fallthru
          _
        // Predicated region
        $region61: #{tpu_custom_call.1} parent=51 // pred_check
          %p380 = pneg %p102
        $region62: #{tpu_custom_call.1} parent=51 // pred_check_branch
          %382 = sbr.rel (%p380) target = $region64
        $region63: #{tpu_custom_call.1} parent=51 // pred_region
          %383 = dma.done [#allocation6], 256
        $region64: #{tpu_custom_call.1} parent=51 // pred_fallthru
          _
        // Predicated region
        $region65: #{tpu_custom_call.1} parent=51 // pred_check
          %p384 = pneg %p144
        $region66: #{tpu_custom_call.1} parent=51 // pred_check_branch
          %386 = sbr.rel (%p384) target = $region68
        $region67: #{tpu_custom_call.1} parent=51 // pred_region
          %387 = dma.done [#allocation9], 384
        $region68: #{tpu_custom_call.1} parent=51 // pred_fallthru
          _
        %s388 = sand.u32 %s42, 1
        %s389 = scalar_lea.sflag [#allocation3], %s388
        %s390 = sand.u32 %s42, 1
        %s391 = smul.addr %s390, 8
        %s392 = scalar_lea.vmem [#allocation2], %s391
        %p393 = pneg %p55
        %p394 = pneg %p52
        %s395 = sand.u32 %s34, 1
        %s396 = scalar_lea.sflag [#allocation6], %s395
        %s397 = sand.u32 %s68, 1
        %s398 = smul.addr %s397, 16
        %s399 = scalar_lea.vmem [#allocation5], %s398
        %p400 = pneg %p81
        %p401 = pneg %p78
        %p402 = pneg %p102
        %p403 = pneg %p99
        %p404 = pneg %p123
        %p405 = pneg %p120
        %p406 = pneg %p144
        %p407 = pneg %p141
        %p408 = pneg %p165
        %p409 = pneg %p162
        %p410 = pneg %p186
        %p411 = pneg %p183
        %p412 = pneg %p207
        %p413 = pneg %p204
        %p414 = pneg %p233
        %p415 = pneg %p230
        %s416 = sand.u32 %s220, 1
        %s417 = scalar_lea.sflag [#allocation4], %s416
        %s418 = sand.u32 %s220, 1
        %s419 = smul.addr %s418, 4
        %s420 = scalar_lea.vmem [#allocation10], %s419
        %p421 = pneg %p259
        %p422 = pneg %p256
        %s423 = sand.u32 %s246, 1
        %s424 = scalar_lea.sflag [#allocation12], %s423
        %s425 = sand.u32 %s246, 1
        %s426 = smul.addr %s425, 4
        %s427 = scalar_lea.vmem [#allocation11], %s426
        %v428 = vld [vmem:[%s366] sm:$0xff]
        %v429 = vld [vmem:[%s375] sm:$0xff]
        %v430 = vld [vmem:[%s375 + $0x8] sm:$0xff]
        %v431 = vld [vmem:[#allocation7] sm:$0xff]
        %v432 = vld [vmem:[#allocation7 + $0x8] sm:$0xff]
        %v433 = vld [vmem:[%s3] sm:$0x1]
        %v435 = vlaneseq
        %v436 = vshrl.u32 %v435, 7
        %v437 = vsub.s32 0, %v436
        %v438 = vrot.slane %v433, %v437
        %vm440 = vcmask 130048
        %v442 = vsel %vm440, %v428, 0
        %444 = vmatprep.subr.mxu0 0.0
        %445 = vmatpush1.msra.mxu0 0.0
        %446 = vmatprep.subr.mxu0 0.0
        %447 = vmatpush1.msra.mxu0 0.0
        %448 = vmatprep.subr.mxu0 0.0
        %449 = vmatpush1.msra.mxu0 0.0
        %450 = vmatprep.subr.mxu0 0.0
        %451 = vmatpush1.msra.mxu0 0.0
        %452 = vmatprep.subr.mxu0 0.0
        %453 = vmatpush1.msra.mxu0 0.0
        %454 = vmatprep.subr.mxu0 0.0
        %455 = vmatpush1.msra.mxu0 0.0
        %456 = vmatprep.subr.mxu0 0.0
        %457 = vmatpush1.msra.mxu0 0.0
        %458 = vmatprep.subr.mxu0 0.0
        %459 = vmatpush1.msra.mxu0 0.0
        %460 = vmatprep.subr.mxu0 0.0
        %461 = vmatpush1.msra.mxu0 0.0
        %462 = vmatprep.subr.mxu0 0.0
        %463 = vmatpush1.msra.mxu0 0.0
        %464 = vmatprep.subr.mxu0 0.0
        %465 = vmatpush1.msra.mxu0 0.0
        %466 = vmatprep.subr.mxu0 0.0
        %467 = vmatpush1.msra.mxu0 0.0
        %468 = vmatprep.subr.mxu0 0.0
        %469 = vmatpush1.msra.mxu0 0.0
        %470 = vmatprep.subr.mxu0 0.0
        %471 = vmatpush1.msra.mxu0 0.0
        %472 = vmatprep.subr.mxu0 0.0
        %473 = vmatpush1.msra.mxu0 %v432
        %474 = vmatprep.subr.mxu0 0.0
        %475 = vmatpush1.msra.mxu0 %v431
        %476 = vmatprep.subr.mxu0 0.0
        %477 = vmatpush2.msra.mxu0 0.0
        %478 = vmatprep.subr.mxu0 0.0
        %479 = vmatpush2.msra.mxu0 0.0
        %480 = vmatprep.subr.mxu0 0.0
        %481 = vmatpush2.msra.mxu0 0.0
        %482 = vmatprep.subr.mxu0 0.0
        %483 = vmatpush2.msra.mxu0 0.0
        %484 = vmatprep.subr.mxu0 0.0
        %485 = vmatpush2.msra.mxu0 0.0
        %486 = vmatprep.subr.mxu0 0.0
        %487 = vmatpush2.msra.mxu0 0.0
        %488 = vmatprep.subr.mxu0 0.0
        %489 = vmatpush2.msra.mxu0 0.0
        %490 = vmatprep.subr.mxu0 0.0
        %491 = vmatpush2.msra.mxu0 0.0
        %492 = vmatprep.subr.mxu0 0.0
        %493 = vmatpush2.msra.mxu0 0.0
        %494 = vmatprep.subr.mxu0 0.0
        %495 = vmatpush2.msra.mxu0 0.0
        %496 = vmatprep.subr.mxu0 0.0
        %497 = vmatpush2.msra.mxu0 0.0
        %498 = vmatprep.subr.mxu0 0.0
        %499 = vmatpush2.msra.mxu0 0.0
        %500 = vmatprep.subr.mxu0 0.0
        %501 = vmatpush2.msra.mxu0 0.0
        %502 = vmatprep.subr.mxu0 0.0
        %503 = vmatpush2.msra.mxu0 0.0
        %504 = vmatprep.subr.mxu0 0.0
        %505 = vmatpush2.msra.mxu0 0.0
        %506 = vmatprep.subr.mxu0 0.0
        %507 = vmatpush2.msra.mxu0 0.0
        %508 = vmatprep.mubr.f32.mxu0 0.0
        %509 = vmatmul.mubr.f32.gmra.mxu0 %v442
        %v510 = vpop.f32.mrf.mxu0
        %v511 = vadd.f32 %v438, %v510
        %v512 = vpop.f32.mrf.mxu0
        %513 = vdwg.mxu0
        %v514 = vmax.f32 %v511, 0.0
        %v515 = vld [vmem:[#allocation8] sm:$0xff]
        %v516 = vld [vmem:[#allocation8 + $0x8] sm:$0xff]
        %v517 = vld [vmem:[#allocation8 + $0x10] sm:$0xff]
        %v518 = vld [vmem:[%s5] sm:$0x1]
        %v520 = vlaneseq
        %v521 = vshrl.u32 %v520, 7
        %v522 = vsub.s32 0, %v521
        %v523 = vrot.slane %v518, %v522
        %vm525 = vcmask 195584
        %v527 = vsel %vm525, %v429, 0
        %v530 = vsel %vm525, %v430, 0
        %532 = vmatprep.subr.mxu0 0.0
        %533 = vmatpush1.msra.mxu0 0.0
        %534 = vmatprep.subr.mxu0 0.0
        %535 = vmatpush1.msra.mxu0 0.0
        %536 = vmatprep.subr.mxu0 0.0
        %537 = vmatpush1.msra.mxu0 0.0
        %538 = vmatprep.subr.mxu0 0.0
        %539 = vmatpush1.msra.mxu0 0.0
        %540 = vmatprep.subr.mxu0 0.0
        %541 = vmatpush1.msra.mxu0 0.0
        %542 = vmatprep.subr.mxu0 0.0
        %543 = vmatpush1.msra.mxu0 0.0
        %544 = vmatprep.subr.mxu0 0.0
        %545 = vmatpush1.msra.mxu0 0.0
        %546 = vmatprep.subr.mxu0 0.0
        %547 = vmatpush1.msra.mxu0 0.0
        %548 = vmatprep.subr.mxu0 0.0
        %549 = vmatpush1.msra.mxu0 0.0
        %550 = vmatprep.subr.mxu0 0.0
        %551 = vmatpush1.msra.mxu0 0.0
        %552 = vmatprep.subr.mxu0 0.0
        %553 = vmatpush1.msra.mxu0 0.0
        %554 = vmatprep.subr.mxu0 0.0
        %555 = vmatpush1.msra.mxu0 0.0
        %556 = vmatprep.subr.mxu0 0.0
        %557 = vmatpush1.msra.mxu0 0.0
        %558 = vmatprep.subr.mxu0 0.0
        %559 = vmatpush1.msra.mxu0 %v517
        %560 = vmatprep.subr.mxu0 0.0
        %561 = vmatpush1.msra.mxu0 %v516
        %562 = vmatprep.subr.mxu0 0.0
        %563 = vmatpush1.msra.mxu0 %v515
        %564 = vmatprep.subr.mxu0 0.0
        %565 = vmatpush2.msra.mxu0 0.0
        %566 = vmatprep.subr.mxu0 0.0
        %567 = vmatpush2.msra.mxu0 0.0
        %568 = vmatprep.subr.mxu0 0.0
        %569 = vmatpush2.msra.mxu0 0.0
        %570 = vmatprep.subr.mxu0 0.0
        %571 = vmatpush2.msra.mxu0 0.0
        %572 = vmatprep.subr.mxu0 0.0
        %573 = vmatpush2.msra.mxu0 0.0
        %574 = vmatprep.subr.mxu0 0.0
        %575 = vmatpush2.msra.mxu0 0.0
        %576 = vmatprep.subr.mxu0 0.0
        %577 = vmatpush2.msra.mxu0 0.0
        %578 = vmatprep.subr.mxu0 0.0
        %579 = vmatpush2.msra.mxu0 0.0
        %580 = vmatprep.subr.mxu0 0.0
        %581 = vmatpush2.msra.mxu0 0.0
        %582 = vmatprep.subr.mxu0 0.0
        %583 = vmatpush2.msra.mxu0 0.0
        %584 = vmatprep.subr.mxu0 0.0
        %585 = vmatpush2.msra.mxu0 0.0
        %586 = vmatprep.subr.mxu0 0.0
        %587 = vmatpush2.msra.mxu0 0.0
        %588 = vmatprep.subr.mxu0 0.0
        %589 = vmatpush2.msra.mxu0 0.0
        %590 = vmatprep.subr.mxu0 0.0
        %591 = vmatpush2.msra.mxu0 0.0
        %592 = vmatprep.subr.mxu0 0.0
        %593 = vmatpush2.msra.mxu0 0.0
        %594 = vmatprep.subr.mxu0 0.0
        %595 = vmatpush2.msra.mxu0 0.0
        %596 = vmatprep.mubr.f32.mxu0 0.0
        %597 = vmatmul.mubr.f32.gmra.mxu0 %v527
        %v598 = vpop.f32.mrf.mxu0
        %v599 = vadd.f32 %v523, %v598
        %v600 = vpop.f32.mrf.mxu0
        %601 = vmatprep.mubr.f32.mxu0 0.0
        %602 = vmatmul.mubr.f32.gmra.mxu0 %v530
        %v603 = vpop.f32.mrf.mxu0
        %v604 = vadd.f32 %v523, %v603
        %v605 = vpop.f32.mrf.mxu0
        %606 = vdwg.mxu0
        %v607 = vmax.f32 %v599, 0.0
        %v608 = vmax.f32 %v604, 0.0
        %v609 = vld [vmem:[%s6] sm:$0x1]
        %v610 = vlaneseq
        %v611 = vshrl.u32 %v610, 7
        %v612 = vsub.s32 0, %v611
        %v613 = vrot.slane %v609, %v612
        %v614 = vmul.f32 %v607, %v613
        %v615 = vmul.f32 %v608, %v613
        %v616 = vld [vmem:[%s6 + $0x1] sm:$0x1]
        %v617 = vlaneseq
        %v618 = vshrl.u32 %v617, 7
        %v619 = vsub.s32 0, %v618
        %v620 = vrot.slane %v616, %v619
        %v621 = vmul.f32 %v607, %v620
        %v622 = vmul.f32 %v608, %v620
        %v623 = vld [vmem:[%s6 + $0x2] sm:$0x1]
        %v624 = vlaneseq
        %v625 = vshrl.u32 %v624, 7
        %v626 = vsub.s32 0, %v625
        %v627 = vrot.slane %v623, %v626
        %v628 = vmul.f32 %v607, %v627
        %v629 = vmul.f32 %v608, %v627
        %v630 = vld [vmem:[%s6 + $0x3] sm:$0x1]
        %v631 = vlaneseq
        %v632 = vshrl.u32 %v631, 7
        %v633 = vsub.s32 0, %v632
        %v634 = vrot.slane %v630, %v633
        %v635 = vmul.f32 %v607, %v634
        %v636 = vmul.f32 %v608, %v634
        %v637 = vld [vmem:[%s7] sm:$0x1]
        %v639 = vlaneseq
        %v640 = vshrl.u32 %v639, 7
        %v641 = vsub.s32 0, %v640
        %v642 = vrot.slane %v637, %v641
        %644 = vmatprep.subr.mxu0 0.0
        %645 = vmatpush1.xpose.msra.mxu0 0.0
        %646 = vmatprep.subr.mxu0 0.0
        %647 = vmatpush1.xpose.msra.mxu0 0.0
        %648 = vmatprep.subr.mxu0 0.0
        %649 = vmatpush1.xpose.msra.mxu0 0.0
        %650 = vmatprep.subr.mxu0 0.0
        %651 = vmatpush1.xpose.msra.mxu0 0.0
        %652 = vmatprep.subr.mxu0 0.0
        %653 = vmatpush1.xpose.msra.mxu0 0.0
        %654 = vmatprep.subr.mxu0 0.0
        %655 = vmatpush1.xpose.msra.mxu0 0.0
        %656 = vmatprep.subr.mxu0 0.0
        %657 = vmatpush1.xpose.msra.mxu0 0.0
        %658 = vmatprep.subr.mxu0 0.0
        %659 = vmatpush1.xpose.msra.mxu0 0.0
        %660 = vmatprep.subr.mxu0 0.0
        %661 = vmatpush1.xpose.msra.mxu0 %v636
        %662 = vmatprep.subr.mxu0 0.0
        %663 = vmatpush1.xpose.msra.mxu0 %v635
        %664 = vmatprep.subr.mxu0 0.0
        %665 = vmatpush1.xpose.msra.mxu0 %v629
        %666 = vmatprep.subr.mxu0 0.0
        %667 = vmatpush1.xpose.msra.mxu0 %v628
        %668 = vmatprep.subr.mxu0 0.0
        %669 = vmatpush1.xpose.msra.mxu0 %v622
        %670 = vmatprep.subr.mxu0 0.0
        %671 = vmatpush1.xpose.msra.mxu0 %v621
        %672 = vmatprep.subr.mxu0 0.0
        %673 = vmatpush1.xpose.msra.mxu0 %v615
        %674 = vmatprep.subr.mxu0 0.0
        %675 = vmatpush1.xpose.msra.mxu0 %v614
        %676 = vmatprep.subr.mxu0 0.0
        %677 = vmatpush2.xpose.msra.mxu0 0.0
        %678 = vmatprep.subr.mxu0 0.0
        %679 = vmatpush2.xpose.msra.mxu0 0.0
        %680 = vmatprep.subr.mxu0 0.0
        %681 = vmatpush2.xpose.msra.mxu0 0.0
        %682 = vmatprep.subr.mxu0 0.0
        %683 = vmatpush2.xpose.msra.mxu0 0.0
        %684 = vmatprep.subr.mxu0 0.0
        %685 = vmatpush2.xpose.msra.mxu0 0.0
        %686 = vmatprep.subr.mxu0 0.0
        %687 = vmatpush2.xpose.msra.mxu0 0.0
        %688 = vmatprep.subr.mxu0 0.0
        %689 = vmatpush2.xpose.msra.mxu0 0.0
        %690 = vmatprep.subr.mxu0 0.0
        %691 = vmatpush2.xpose.msra.mxu0 0.0
        %692 = vmatprep.subr.mxu0 0.0
        %693 = vmatpush2.xpose.msra.mxu0 0.0
        %694 = vmatprep.subr.mxu0 0.0
        %695 = vmatpush2.xpose.msra.mxu0 0.0
        %696 = vmatprep.subr.mxu0 0.0
        %697 = vmatpush2.xpose.msra.mxu0 0.0
        %698 = vmatprep.subr.mxu0 0.0
        %699 = vmatpush2.xpose.msra.mxu0 0.0
        %700 = vmatprep.subr.mxu0 0.0
        %701 = vmatpush2.xpose.msra.mxu0 0.0
        %702 = vmatprep.subr.mxu0 0.0
        %703 = vmatpush2.xpose.msra.mxu0 0.0
        %704 = vmatprep.subr.mxu0 0.0
        %705 = vmatpush2.xpose.msra.mxu0 0.0
        %706 = vmatprep.subr.mxu0 0.0
        %707 = vmatpush2.xpose.msra.mxu0 0.0
        %708 = vmatprep.mubr.f32.mxu0 0.0
        %709 = vmatmul.mubr.f32.gmra.mxu0 %v514
        %v710 = vpop.f32.mrf.mxu0
        %v711 = vadd.f32 %v642, %v710
        %v712 = vpop.f32.mrf.mxu0
        %713 = vdwg.mxu0
        %v714 = vand.u32 2147483647, %v428
        %v715 = vsel %vm440, %v714, 0.0
        %716 = vadd.xlane.f32.xlu0 %v715
        %v717 = vpop.xlane.xlu0 %716
        %vm718 = vcmp.eq.f32.partialorder %v717, 0.0
        %v719 = vsel %vm718, 1, 0
        %vm720 = vcmp.eq.s32.totalorder %v719, 1
        %v721 = vsel %vm720, -inf, %v711
        %v722 = vcombine.high %v721, 0.0
        %v724 = vunpack.c.l.s4 1983009808
        %v725 = vunpack.c.0.s8 %v724
        %v726 = vlaneseq
        %v727 = vshrl.u32 %v726, 7
        %v728 = vsub.s32 %v725, %v727
        %v729 = vrot.slane %v721, %v728
        %v731 = vunpack.c.l.s4 1983009808
        %v732 = vunpack.c.0.s8 %v731
        %v733 = vlaneseq
        %v734 = vshrl.u32 %v733, 7
        %v735 = vsub.s32 %v732, %v734
        %v736 = vrot.slane %v722, %v735
        %v737 = vcombine.high %v729, 0.0
        %v739 = vunpack.c.l.s4 1934713408
        %v740 = vunpack.c.0.s8 %v739
        %v741 = vlaneseq
        %v742 = vshrl.u32 %v741, 7
        %v743 = vsub.s32 %v740, %v742
        %v744 = vrot.slane %v729, %v743
        %v746 = vunpack.c.l.s4 1934713408
        %v747 = vunpack.c.0.s8 %v746
        %v748 = vlaneseq
        %v749 = vshrl.u32 %v748, 7
        %v750 = vsub.s32 %v747, %v749
        %v751 = vrot.slane %v737, %v750
        %v752 = vcombine.high %v736, 0.0
        %v754 = vunpack.c.l.s4 1934713408
        %v755 = vunpack.c.0.s8 %v754
        %v756 = vlaneseq
        %v757 = vshrl.u32 %v756, 7
        %v758 = vsub.s32 %v755, %v757
        %v759 = vrot.slane %v736, %v758
        %v761 = vunpack.c.l.s4 1934713408
        %v762 = vunpack.c.0.s8 %v761
        %v763 = vlaneseq
        %v764 = vshrl.u32 %v763, 7
        %v765 = vsub.s32 %v762, %v764
        %v766 = vrot.slane %v752, %v765
        %v767 = vcombine.high %v744, 0.0
        %v768 = vcombine.high %v751, 0.0
        %v769 = vcombine.high %v759, 0.0
        %v770 = vcombine.high %v766, 0.0
        %772 = vrot.lane.b32.xlu0 %v767, 16
        %v773 = vpop.permute.xlu0 %772
        %776 = vrot.lane.b32.xlu0 %v751, 32
        %v777 = vpop.permute.xlu0 %776
        %780 = vrot.lane.b32.xlu0 %v768, 48
        %v781 = vpop.permute.xlu0 %780
        %784 = vrot.lane.b32.xlu0 %v759, 64
        %v785 = vpop.permute.xlu0 %784
        %788 = vrot.lane.b32.xlu0 %v769, 80
        %v789 = vpop.permute.xlu0 %788
        %792 = vrot.lane.b32.xlu0 %v766, 96
        %v793 = vpop.permute.xlu0 %792
        %796 = vrot.lane.b32.xlu0 %v770, 112
        %v797 = vpop.permute.xlu0 %796
        %v799 = vsel %vm440, %v744, %v773
        %vm800 = vcmask 261120
        %v801 = vsel %vm800, %v799, %v777
        %vm802 = vcmask 392192
        %v803 = vsel %vm802, %v801, %v781
        %vm804 = vcmask 523264
        %v805 = vsel %vm804, %v803, %v785
        %vm806 = vcmask 654336
        %v807 = vsel %vm806, %v805, %v789
        %vm808 = vcmask 785408
        %v809 = vsel %vm808, %v807, %v793
        %vm810 = vcmask 916480
        %v811 = vsel %vm810, %v809, %v797
        %813 = vrot.lane.b32.xlu0 %v721, 112
        %v814 = vpop.permute.xlu0 %813
        %v816 = vcombine.high %v814, 0.0
        %v818 = vunpack.c.l.s4 1983009808
        %v819 = vunpack.c.0.s8 %v818
        %v820 = vlaneseq
        %v821 = vshrl.u32 %v820, 7
        %v822 = vsub.s32 %v819, %v821
        %v823 = vrot.slane %v814, %v822
        %v825 = vunpack.c.l.s4 1983009808
        %v826 = vunpack.c.0.s8 %v825
        %v827 = vlaneseq
        %v828 = vshrl.u32 %v827, 7
        %v829 = vsub.s32 %v826, %v828
        %v830 = vrot.slane %v816, %v829
        %v831 = vcombine.high %v823, 0.0
        %v833 = vunpack.c.l.s4 1934713408
        %v834 = vunpack.c.0.s8 %v833
        %v835 = vlaneseq
        %v836 = vshrl.u32 %v835, 7
        %v837 = vsub.s32 %v834, %v836
        %v838 = vrot.slane %v823, %v837
        %v840 = vunpack.c.l.s4 1934713408
        %v841 = vunpack.c.0.s8 %v840
        %v842 = vlaneseq
        %v843 = vshrl.u32 %v842, 7
        %v844 = vsub.s32 %v841, %v843
        %v845 = vrot.slane %v831, %v844
        %v846 = vcombine.high %v830, 0.0
        %v848 = vunpack.c.l.s4 1934713408
        %v849 = vunpack.c.0.s8 %v848
        %v850 = vlaneseq
        %v851 = vshrl.u32 %v850, 7
        %v852 = vsub.s32 %v849, %v851
        %v853 = vrot.slane %v830, %v852
        %v855 = vunpack.c.l.s4 1934713408
        %v856 = vunpack.c.0.s8 %v855
        %v857 = vlaneseq
        %v858 = vshrl.u32 %v857, 7
        %v859 = vsub.s32 %v856, %v858
        %v860 = vrot.slane %v846, %v859
        %v861 = vcombine.high %v838, 0.0
        %v862 = vcombine.high %v845, 0.0
        %v863 = vcombine.high %v853, 0.0
        %v864 = vcombine.high %v860, 0.0
        %866 = vrot.lane.b32.xlu0 %v861, 16
        %v867 = vpop.permute.xlu0 %866
        %870 = vrot.lane.b32.xlu0 %v845, 32
        %v871 = vpop.permute.xlu0 %870
        %874 = vrot.lane.b32.xlu0 %v862, 48
        %v875 = vpop.permute.xlu0 %874
        %878 = vrot.lane.b32.xlu0 %v853, 64
        %v879 = vpop.permute.xlu0 %878
        %882 = vrot.lane.b32.xlu0 %v863, 80
        %v883 = vpop.permute.xlu0 %882
        %886 = vrot.lane.b32.xlu0 %v860, 96
        %v887 = vpop.permute.xlu0 %886
        %890 = vrot.lane.b32.xlu0 %v864, 112
        %v891 = vpop.permute.xlu0 %890
        %v893 = vsel %vm440, %v838, %v867
        %v894 = vsel %vm800, %v893, %v871
        %v895 = vsel %vm802, %v894, %v875
        %v896 = vsel %vm804, %v895, %v879
        %v897 = vsel %vm806, %v896, %v883
        %v898 = vsel %vm808, %v897, %v887
        %v899 = vsel %vm810, %v898, %v891
        %900 = vrot.lane.b32.xlu0 %v721, 96
        %v901 = vpop.permute.xlu0 %900
        %v903 = vcombine.high %v901, 0.0
        %v905 = vunpack.c.l.s4 1983009808
        %v906 = vunpack.c.0.s8 %v905
        %v907 = vlaneseq
        %v908 = vshrl.u32 %v907, 7
        %v909 = vsub.s32 %v906, %v908
        %v910 = vrot.slane %v901, %v909
        %v912 = vunpack.c.l.s4 1983009808
        %v913 = vunpack.c.0.s8 %v912
        %v914 = vlaneseq
        %v915 = vshrl.u32 %v914, 7
        %v916 = vsub.s32 %v913, %v915
        %v917 = vrot.slane %v903, %v916
        %v918 = vcombine.high %v910, 0.0
        %v920 = vunpack.c.l.s4 1934713408
        %v921 = vunpack.c.0.s8 %v920
        %v922 = vlaneseq
        %v923 = vshrl.u32 %v922, 7
        %v924 = vsub.s32 %v921, %v923
        %v925 = vrot.slane %v910, %v924
        %v927 = vunpack.c.l.s4 1934713408
        %v928 = vunpack.c.0.s8 %v927
        %v929 = vlaneseq
        %v930 = vshrl.u32 %v929, 7
        %v931 = vsub.s32 %v928, %v930
        %v932 = vrot.slane %v918, %v931
        %v933 = vcombine.high %v917, 0.0
        %v935 = vunpack.c.l.s4 1934713408
        %v936 = vunpack.c.0.s8 %v935
        %v937 = vlaneseq
        %v938 = vshrl.u32 %v937, 7
        %v939 = vsub.s32 %v936, %v938
        %v940 = vrot.slane %v917, %v939
        %v942 = vunpack.c.l.s4 1934713408
        %v943 = vunpack.c.0.s8 %v942
        %v944 = vlaneseq
        %v945 = vshrl.u32 %v944, 7
        %v946 = vsub.s32 %v943, %v945
        %v947 = vrot.slane %v933, %v946
        %v948 = vcombine.high %v925, 0.0
        %v949 = vcombine.high %v932, 0.0
        %v950 = vcombine.high %v940, 0.0
        %v951 = vcombine.high %v947, 0.0
        %953 = vrot.lane.b32.xlu0 %v948, 16
        %v954 = vpop.permute.xlu0 %953
        %957 = vrot.lane.b32.xlu0 %v932, 32
        %v958 = vpop.permute.xlu0 %957
        %961 = vrot.lane.b32.xlu0 %v949, 48
        %v962 = vpop.permute.xlu0 %961
        %965 = vrot.lane.b32.xlu0 %v940, 64
        %v966 = vpop.permute.xlu0 %965
        %969 = vrot.lane.b32.xlu0 %v950, 80
        %v970 = vpop.permute.xlu0 %969
        %973 = vrot.lane.b32.xlu0 %v947, 96
        %v974 = vpop.permute.xlu0 %973
        %977 = vrot.lane.b32.xlu0 %v951, 112
        %v978 = vpop.permute.xlu0 %977
        %v980 = vsel %vm440, %v925, %v954
        %v981 = vsel %vm800, %v980, %v958
        %v982 = vsel %vm802, %v981, %v962
        %v983 = vsel %vm804, %v982, %v966
        %v984 = vsel %vm806, %v983, %v970
        %v985 = vsel %vm808, %v984, %v974
        %v986 = vsel %vm810, %v985, %v978
        %987 = vrot.lane.b32.xlu0 %v721, 80
        %v988 = vpop.permute.xlu0 %987
        %v990 = vcombine.high %v988, 0.0
        %v992 = vunpack.c.l.s4 1983009808
        %v993 = vunpack.c.0.s8 %v992
        %v994 = vlaneseq
        %v995 = vshrl.u32 %v994, 7
        %v996 = vsub.s32 %v993, %v995
        %v997 = vrot.slane %v988, %v996
        %v999 = vunpack.c.l.s4 1983009808
        %v1000 = vunpack.c.0.s8 %v999
        %v1001 = vlaneseq
        %v1002 = vshrl.u32 %v1001, 7
        %v1003 = vsub.s32 %v1000, %v1002
        %v1004 = vrot.slane %v990, %v1003
        %v1005 = vcombine.high %v997, 0.0
        %v1007 = vunpack.c.l.s4 1934713408
        %v1008 = vunpack.c.0.s8 %v1007
        %v1009 = vlaneseq
        %v1010 = vshrl.u32 %v1009, 7
        %v1011 = vsub.s32 %v1008, %v1010
        %v1012 = vrot.slane %v997, %v1011
        %v1014 = vunpack.c.l.s4 1934713408
        %v1015 = vunpack.c.0.s8 %v1014
        %v1016 = vlaneseq
        %v1017 = vshrl.u32 %v1016, 7
        %v1018 = vsub.s32 %v1015, %v1017
        %v1019 = vrot.slane %v1005, %v1018
        %v1020 = vcombine.high %v1004, 0.0
        %v1022 = vunpack.c.l.s4 1934713408
        %v1023 = vunpack.c.0.s8 %v1022
        %v1024 = vlaneseq
        %v1025 = vshrl.u32 %v1024, 7
        %v1026 = vsub.s32 %v1023, %v1025
        %v1027 = vrot.slane %v1004, %v1026
        %v1029 = vunpack.c.l.s4 1934713408
        %v1030 = vunpack.c.0.s8 %v1029
        %v1031 = vlaneseq
        %v1032 = vshrl.u32 %v1031, 7
        %v1033 = vsub.s32 %v1030, %v1032
        %v1034 = vrot.slane %v1020, %v1033
        %v1035 = vcombine.high %v1012, 0.0
        %v1036 = vcombine.high %v1019, 0.0
        %v1037 = vcombine.high %v1027, 0.0
        %v1038 = vcombine.high %v1034, 0.0
        %1040 = vrot.lane.b32.xlu0 %v1035, 16
        %v1041 = vpop.permute.xlu0 %1040
        %1044 = vrot.lane.b32.xlu0 %v1019, 32
        %v1045 = vpop.permute.xlu0 %1044
        %1048 = vrot.lane.b32.xlu0 %v1036, 48
        %v1049 = vpop.permute.xlu0 %1048
        %1052 = vrot.lane.b32.xlu0 %v1027, 64
        %v1053 = vpop.permute.xlu0 %1052
        %1056 = vrot.lane.b32.xlu0 %v1037, 80
        %v1057 = vpop.permute.xlu0 %1056
        %1060 = vrot.lane.b32.xlu0 %v1034, 96
        %v1061 = vpop.permute.xlu0 %1060
        %1064 = vrot.lane.b32.xlu0 %v1038, 112
        %v1065 = vpop.permute.xlu0 %1064
        %v1067 = vsel %vm440, %v1012, %v1041
        %v1068 = vsel %vm800, %v1067, %v1045
        %v1069 = vsel %vm802, %v1068, %v1049
        %v1070 = vsel %vm804, %v1069, %v1053
        %v1071 = vsel %vm806, %v1070, %v1057
        %v1072 = vsel %vm808, %v1071, %v1061
        %v1073 = vsel %vm810, %v1072, %v1065
        %v1075 = vrot.slane %v899, 7
        %v1078 = vrot.slane %v986, 6
        %v1081 = vrot.slane %v1073, 5
        %vm1083 = vcmask 1040384
        %v1084 = vsel %vm1083, %v811, %v1075
        %vm1085 = vcmask 1041408
        %v1086 = vsel %vm1085, %v1084, %v1078
        %vm1087 = vcmask 1042432
        %v1088 = vsel %vm1087, %v1086, %v1081
        %1089 = vst [vmem:[%s427] sm:$0xf] %v1088
        %vm1090 = vcmask 1043456
        %v1091 = vsel %vm1090, %v1088, -inf
        %1092 = vmax.xlane.f32.xlu0 %v1091
        %v1093 = vpop.xlane.xlu0 %1092
        %v1094 = vsub.f32 %v1088, %v1093
        %v1095 = vmul.f32 %v1094, 1.442695
        %v1096 = vpow.pop %v1095
        %v1097 = vsel %vm1090, %v1096, 0.0
        %1098 = vadd.xlane.f32.xlu0 %v1097
        %v1099 = vpop.xlane.xlu0 %1098
        %v1100 = vrcp.pop %v1099
        %v1101 = vmul.f32 %v1099, %v1100
        %v1102 = vsub.f32 2.0, %v1101
        %v1103 = vmul.f32 %v1100, %v1102
        %v1104 = vmul.f32 %v1096, %v1103
        %1105 = vst [vmem:[%s420] sm:$0xf] %v1104
        %s1106 = sand.u32 %s220, 1
        %s1107 = scalar_lea.sflag [#allocation4], %s1106
        %s1108 = sand.u32 %s220, 1
        %s1109 = smul.addr %s1108, 4
        %s1110 = scalar_lea.vmem [#allocation10], %s1109
        %s1111 = sand.u32 %s246, 1
        %s1112 = scalar_lea.sflag [#allocation12], %s1111
        %s1113 = sand.u32 %s246, 1
        %s1114 = smul.addr %s1113, 4
        %s1115 = scalar_lea.vmem [#allocation11], %s1114
        // Predicated region
        $region69: #{tpu_custom_call.1} parent=51 // pred_check
          %p1116 = pneg %p230
        $region70: #{tpu_custom_call.1} parent=51 // pred_check_branch
          %1118 = sbr.rel (%p1116) target = $region72
        $region71: #{tpu_custom_call.1} parent=51 // pred_region
          %s1120 = ssub.s32 64, 64
          %1121 = vsyncadd %s1107, %s1120
          %s1122 = smul.addr %s34, 64
          %s1123 = scalar_lea.hbm %s8, %s1122
          %s1125 = sshll.u32 %s1110, 4
          %s1126 = int_to_ptr.vmem [resolvable:$true] %s1125
          %1128 = dma.vmem_to_hbm [thread:$0]  %s1126, 64, %s1123, %s1107
        $region72: #{tpu_custom_call.1} parent=51 // pred_fallthru
          _
        // Predicated region
        $region73: #{tpu_custom_call.1} parent=51 // pred_check
          %p1129 = pneg %p256
        $region74: #{tpu_custom_call.1} parent=51 // pred_check_branch
          %1131 = sbr.rel (%p1129) target = $region76
        $region75: #{tpu_custom_call.1} parent=51 // pred_region
          %s1133 = ssub.s32 64, 64
          %1134 = vsyncadd %s1112, %s1133
          %s1135 = smul.addr %s34, 64
          %s1136 = scalar_lea.hbm %s9, %s1135
          %s1138 = sshll.u32 %s1115, 4
          %s1139 = int_to_ptr.vmem [resolvable:$true] %s1138
          %1141 = dma.vmem_to_hbm [thread:$0]  %s1139, 64, %s1136, %s1112
        $region76: #{tpu_custom_call.1} parent=51 // pred_fallthru
          _
      $region52: #{tpu_custom_call.1} parent=5 // pred_fallthru
        _
      %p1142 = scmp.le.s32.totalorder 2, %s29
      // Predicated region
      $region77: #{tpu_custom_call.1} parent=5 // pred_check
        %p1143 = pneg %p1142
      $region78: #{tpu_custom_call.1} parent=5 // pred_check_branch
        %1145 = sbr.rel (%p1143) target = $region80
      $region79: #{tpu_custom_call.1} parent=5 // pred_region
        %s1146 = ssub.s32 %s29, 2
        // Predicated region
        $region81: #{tpu_custom_call.1} parent=79 // pred_check
          %p1147 = pneg %p236
        $region82: #{tpu_custom_call.1} parent=79 // pred_check_branch
          %1149 = sbr.rel (%p1147) target = $region84
        $region83: #{tpu_custom_call.1} parent=79 // pred_region
          %s1150 = sand.u32 %s221, 1
          %s1151 = scalar_lea.sflag [#allocation4], %s1150
          %s1152 = sand.u32 %s221, 1
          %s1153 = smul.addr %s1152, 4
          %s1154 = scalar_lea.vmem [#allocation10], %s1153
          %1155 = dma.done %s1151, 64
        $region84: #{tpu_custom_call.1} parent=79 // pred_fallthru
          _
        // Predicated region
        $region85: #{tpu_custom_call.1} parent=79 // pred_check
          %p1156 = pneg %p262
        $region86: #{tpu_custom_call.1} parent=79 // pred_check_branch
          %1158 = sbr.rel (%p1156) target = $region88
        $region87: #{tpu_custom_call.1} parent=79 // pred_region
          %s1159 = sand.u32 %s247, 1
          %s1160 = scalar_lea.sflag [#allocation12], %s1159
          %s1161 = sand.u32 %s247, 1
          %s1162 = smul.addr %s1161, 4
          %s1163 = scalar_lea.vmem [#allocation11], %s1162
          %1164 = dma.done %s1160, 64
        $region88: #{tpu_custom_call.1} parent=79 // pred_fallthru
          _
      $region80: #{tpu_custom_call.1} parent=5 // pred_fallthru
        _
    $region6: #{tpu_custom_call.1} parent=1 // loop_footer
      %s33 = sadd.s32 1, %s29
    $region7: #{tpu_custom_call.1} parent=1 // loop_footer_branch
      %28 = sbr.rel target = $region3
    $region8: #{tpu_custom_call.1} parent=1 // loop_exit
      _
    %1165 = vsyncpa [#allocation3], 1
    %s1166 = scalar_lea.sflag [#allocation3], 1
    %1167 = vsyncpa %s1166, 1
    %1168 = vsyncpa [#allocation6], 1
    %s1169 = scalar_lea.sflag [#allocation6], 1
    %1170 = vsyncpa %s1169, 1
    %1171 = vsyncpa [#allocation9], 1
    %1172 = vsyncpa [#allocation4], 1
    %s1173 = scalar_lea.sflag [#allocation4], 1
    %1174 = vsyncpa %s1173, 1
    %1175 = vsyncpa [#allocation12], 1
    %s1176 = scalar_lea.sflag [#allocation12], 1
    %1177 = vsyncpa %s1176, 1

</llo_original>
